<compile_context>
chip_gen: v7x
topology: tpu7x:2x2x1
jax: 0.10.0
libtpu: 0.0.40
codegen_flags: <defaults>
</compile_context>

<pallas_src>
import functools

import jax
import jax.numpy as jnp
from jax.experimental import pallas as pl
from jax.experimental.pallas import tpu as pltpu

INPUT_DIM = 98
HIDDEN_DIM_1 = 64
HIDDEN_DIM_2 = 32
OUTPUT_DIM = 3


def _round_up(x, m):
    return ((x + m - 1) // m) * m


@functools.lru_cache(maxsize=None)
def _default_batch_tile():
    """Generation-aware default batch tile (rows per grid step)."""
    try:
        kind = jax.devices()[0].device_kind.lower()
    except Exception:  # pragma: no cover - defensive
        kind = ""
    if "v7" in kind:
        # v7x: 3.2 TB/s HBM, 64 MiB VMEM (32 MiB default scoped). tb=8192 ->
        # ~16 MB of double-buffered x/out tiles, still under the default limit.
        return 8192
    # v5e / v6e: tb=2048 already saturates the HBM roofline and fits v5e's
    # 16 MiB default scoped VMEM (~4 MB of tiles).
    return 2048


def _mlp_kernel(x_ref, w1_ref, b1_ref, w2_ref, b2_ref, w3_ref, b3_ref, o_ref):
    # Layer 1: Linear + ReLU (MXU matmul, f32 accumulate; bias/ReLU in f32).
    # MXU shape efficiency is irrelevant here -- the kernel is HBM-bound.
    h1 = jnp.dot(x_ref[...], w1_ref[...], preferred_element_type=jnp.float32)
    h1 = jnp.maximum(h1 + b1_ref[...], 0.0)

    # Layer 2: Linear + ReLU.
    h2 = jnp.dot(h1.astype(w2_ref.dtype), w2_ref[...],
                 preferred_element_type=jnp.float32)
    h2 = jnp.maximum(h2 + b2_ref[...], 0.0)

    # Layer 3: Linear (no activation).
    out = jnp.dot(h2.astype(w3_ref.dtype), w3_ref[...],
                  preferred_element_type=jnp.float32)
    o_ref[...] = (out + b3_ref[...]).astype(o_ref.dtype)


@functools.partial(jax.jit, static_argnames=("batch_tile",))
def _net_forward_impl(x, params, *, batch_tile):
    w1, b1, w2, b2, w3, b3 = params
    B = x.shape[0]

    # Tile selection:
    #   * multiple of 8 (sublane granularity),
    #   * capped at ceil(B/2) so large-enough batches give >= 2 grid steps
    #     (both v7x TensorCores get work; pipeline stays full),
    #   * capped at the generation-aware default so VMEM stays in budget.
    half = _round_up(-(-max(B, 1) // 2), 8)
    tb = max(8, min(batch_tile, half))
    grid = (pl.cdiv(B, tb),)

    # Weights / biases: constant index_map -> resident in VMEM across steps.
    def const(a):
        return pl.BlockSpec(a.shape, lambda i: (0,) * a.ndim,
                            memory_space=pltpu.VMEM)

    return pl.pallas_call(
        _mlp_kernel,
        out_shape=jax.ShapeDtypeStruct((B, OUTPUT_DIM), jnp.float32),
        grid=grid,
        in_specs=[
            pl.BlockSpec((tb, INPUT_DIM), lambda i: (i, 0),
                         memory_space=pltpu.VMEM),
            const(w1), const(b1), const(w2), const(b2), const(w3), const(b3),
        ],
        # Ragged last block: Pallas masks the tail writeback, so no wrapper
        # padding / slicing (and no extra HBM pass) is needed.
        out_specs=pl.BlockSpec((tb, OUTPUT_DIM), lambda i: (i, 0),
                               memory_space=pltpu.VMEM),
        compiler_params=pltpu.CompilerParams(
            dimension_semantics=("parallel",)),
    )(x, w1, b1, w2, b2, w3, b3)


def net_forward(x, params, *, batch_tile=None):
    """x: (B, 98) -> (B, 3) f32. Pass bf16 x/params for the low-HBM path."""
    if batch_tile is None:
        batch_tile = _default_batch_tile()
    return _net_forward_impl(x, params, batch_tile=int(batch_tile))


def init_params(key, dtype=jnp.float32):
    """Deterministic synthetic parameters matching nn.Linear shapes
    (stored as (in, out) -- i.e. torch weight transposed)."""
    ks = jax.random.split(key, 6)

    def lin(kw, kb, fan_in, fan_out):
        bound = 1.0 / jnp.sqrt(fan_in)
        w = jax.random.uniform(kw, (fan_in, fan_out), jnp.float32, -bound, bound)
        b = jax.random.uniform(kb, (1, fan_out), jnp.float32, -bound, bound)
        return w.astype(dtype), b.astype(dtype)

    w1, b1 = lin(ks[0], ks[1], INPUT_DIM, HIDDEN_DIM_1)
    w2, b2 = lin(ks[2], ks[3], HIDDEN_DIM_1, HIDDEN_DIM_2)
    w3, b3 = lin(ks[4], ks[5], HIDDEN_DIM_2, OUTPUT_DIM)
    return (w1, b1, w2, b2, w3, b3)


def reference_forward(x, params):
    w1, b1, w2, b2, w3, b3 = params
    h1 = jax.nn.relu(x @ w1 + b1)
    h2 = jax.nn.relu(h1 @ w2 + b2)
    return h2 @ w3 + b3


if __name__ == "__main__":
    key = jax.random.PRNGKey(0)
    k_params, k_x = jax.random.split(key)

    params = init_params(k_params)

    # Small test (batch=8): single grid step, exact f32 path.
    batch = 8
    x = jax.random.normal(k_x, (batch, INPUT_DIM), dtype=jnp.float32)
    out = net_forward(x, params)
    jax.block_until_ready(out)
    ref = reference_forward(x, params)
    assert out.shape == (batch, OUTPUT_DIM)
    assert jnp.allclose(out, ref, atol=1e-5, rtol=1e-5)

    # Non-tile-multiple batch: exercises the multi-step grid and the ragged
    # (masked) last block, with no wrapper-side padding or output slicing.
    batch2 = 1000
    x2 = jax.random.normal(k_x, (batch2, INPUT_DIM), dtype=jnp.float32)
    out2 = net_forward(x2, params)
    jax.block_until_ready(out2)
    ref2 = reference_forward(x2, params)
    assert out2.shape == (batch2, OUTPUT_DIM)
    assert jnp.allclose(out2, ref2, atol=1e-5, rtol=1e-5)

    # Non-multiple-of-8 batch: masked tail writeback.
    batch3 = 37
    x3 = jax.random.normal(k_x, (batch3, INPUT_DIM), dtype=jnp.float32)
    out3 = net_forward(x3, params)
    jax.block_until_ready(out3)
    ref3 = reference_forward(x3, params)
    assert out3.shape == (batch3, OUTPUT_DIM)
    assert jnp.allclose(out3, ref3, atol=1e-5, rtol=1e-5)

    print("KERNEL_OK")
</pallas_src>

<mosaic_0001>
module attributes {stable_mosaic.version = 11 : i64} {
  func.func @_mlp_kernel(%arg0: i32, %arg1: memref<8x98xf32, #tpu.memory_space<vmem>>, %arg2: memref<98x64xf32, #tpu.memory_space<vmem>>, %arg3: memref<1x64xf32, #tpu.memory_space<vmem>>, %arg4: memref<64x32xf32, #tpu.memory_space<vmem>>, %arg5: memref<1x32xf32, #tpu.memory_space<vmem>>, %arg6: memref<32x3xf32, #tpu.memory_space<vmem>>, %arg7: memref<1x3xf32, #tpu.memory_space<vmem>>, %arg8: memref<8x3xf32, #tpu.memory_space<vmem>>) attributes {dimension_semantics = [#tpu.dimension_semantics<parallel>], iteration_bounds = array<i64: 1>, scalar_prefetch = 0 : i64, scratch_operands = 0 : i64, tpu.core_type = #tpu.core_type<tc>, window_params = [{transform_indices = @transform_0, window_bounds = array<i64: 8, 98>}, {pipeline_mode = #tpu.pipeline_mode<synchronous>, transform_indices = @transform_1, window_bounds = array<i64: 98, 64>}, {pipeline_mode = #tpu.pipeline_mode<synchronous>, transform_indices = @transform_2, window_bounds = array<i64: 1, 64>}, {pipeline_mode = #tpu.pipeline_mode<synchronous>, transform_indices = @transform_3, window_bounds = array<i64: 64, 32>}, {pipeline_mode = #tpu.pipeline_mode<synchronous>, transform_indices = @transform_4, window_bounds = array<i64: 1, 32>}, {pipeline_mode = #tpu.pipeline_mode<synchronous>, transform_indices = @transform_5, window_bounds = array<i64: 32, 3>}, {pipeline_mode = #tpu.pipeline_mode<synchronous>, transform_indices = @transform_6, window_bounds = array<i64: 1, 3>}, {transform_indices = @transform_7, window_bounds = array<i64: 8, 3>}]} {
    %c0 = arith.constant 0 : index
    %c0_0 = arith.constant 0 : index
    %0 = vector.load %arg1[%c0, %c0_0] : memref<8x98xf32, #tpu.memory_space<vmem>>, vector<8x98xf32>
    %c0_1 = arith.constant 0 : index
    %c0_2 = arith.constant 0 : index
    %1 = vector.load %arg2[%c0_1, %c0_2] : memref<98x64xf32, #tpu.memory_space<vmem>>, vector<98x64xf32>
    %cst = arith.constant dense<0.000000e+00> : vector<8x64xf32>
    %2 = tpu.matmul %0, %1, %cst {dimension_numbers = #tpu.dot_dimension_numbers<[1], [0], [0], [1], [0, 0, 1, 1], [], []>} : vector<8x98xf32>, vector<98x64xf32>, vector<8x64xf32> -> vector<8x64xf32>
    %c0_3 = arith.constant 0 : index
    %c0_4 = arith.constant 0 : index
    %3 = vector.load %arg3[%c0_3, %c0_4] : memref<1x64xf32, #tpu.memory_space<vmem>>, vector<1x64xf32>
    %4 = vector.broadcast %3 : vector<1x64xf32> to vector<8x64xf32>
    %5 = arith.addf %2, %4 : vector<8x64xf32>
    %cst_5 = arith.constant 0.000000e+00 : f32
    %6 = vector.broadcast %cst_5 : f32 to vector<8x64xf32>
    %7 = arith.maximumf %5, %6 : vector<8x64xf32>
    %c0_6 = arith.constant 0 : index
    %c0_7 = arith.constant 0 : index
    %8 = vector.load %arg4[%c0_6, %c0_7] : memref<64x32xf32, #tpu.memory_space<vmem>>, vector<64x32xf32>
    %cst_8 = arith.constant dense<0.000000e+00> : vector<8x32xf32>
    %9 = tpu.matmul %7, %8, %cst_8 {dimension_numbers = #tpu.dot_dimension_numbers<[1], [0], [0], [1], [0, 0, 1, 1], [], []>} : vector<8x64xf32>, vector<64x32xf32>, vector<8x32xf32> -> vector<8x32xf32>
    %c0_9 = arith.constant 0 : index
    %c0_10 = arith.constant 0 : index
    %10 = vector.load %arg5[%c0_9, %c0_10] : memref<1x32xf32, #tpu.memory_space<vmem>>, vector<1x32xf32>
    %11 = vector.broadcast %10 : vector<1x32xf32> to vector<8x32xf32>
    %12 = arith.addf %9, %11 : vector<8x32xf32>
    %cst_11 = arith.constant 0.000000e+00 : f32
    %13 = vector.broadcast %cst_11 : f32 to vector<8x32xf32>
    %14 = arith.maximumf %12, %13 : vector<8x32xf32>
    %c0_12 = arith.constant 0 : index
    %c0_13 = arith.constant 0 : index
    %15 = vector.load %arg6[%c0_12, %c0_13] : memref<32x3xf32, #tpu.memory_space<vmem>>, vector<32x3xf32>
    %cst_14 = arith.constant dense<0.000000e+00> : vector<8x3xf32>
    %16 = tpu.matmul %14, %15, %cst_14 {dimension_numbers = #tpu.dot_dimension_numbers<[1], [0], [0], [1], [0, 0, 1, 1], [], []>} : vector<8x32xf32>, vector<32x3xf32>, vector<8x3xf32> -> vector<8x3xf32>
    %c0_15 = arith.constant 0 : index
    %c0_16 = arith.constant 0 : index
    %17 = vector.load %arg7[%c0_15, %c0_16] : memref<1x3xf32, #tpu.memory_space<vmem>>, vector<1x3xf32>
    %18 = vector.broadcast %17 : vector<1x3xf32> to vector<8x3xf32>
    %19 = arith.addf %16, %18 : vector<8x3xf32>
    %c0_17 = arith.constant 0 : index
    %c0_18 = arith.constant 0 : index
    %20 = vector.load %arg8[%c0_17, %c0_18] : memref<8x3xf32, #tpu.memory_space<vmem>>, vector<8x3xf32>
    tpu.vector_store %arg8[%c0_17, %c0_18], %19 {strides = array<i32>} : memref<8x3xf32, #tpu.memory_space<vmem>>, vector<8x3xf32>,
    return
  }
  func.func @transform_0(%arg0: i32) -> (i32, i32) {
    %c0_i32 = arith.constant 0 : i32
    %c0_i32_0 = arith.constant 0 : i32
    return %arg0, %c0_i32 : i32, i32
  }
  func.func @transform_1(%arg0: i32) -> (i32, i32) {
    %c0_i32 = arith.constant 0 : i32
    %c0_i32_0 = arith.constant 0 : i32
    %c0_i32_1 = arith.constant 0 : i32
    return %c0_i32, %c0_i32_0 : i32, i32
  }
  func.func @transform_2(%arg0: i32) -> (i32, i32) {
    %c0_i32 = arith.constant 0 : i32
    %c0_i32_0 = arith.constant 0 : i32
    %c0_i32_1 = arith.constant 0 : i32
    return %c0_i32, %c0_i32_0 : i32, i32
  }
  func.func @transform_3(%arg0: i32) -> (i32, i32) {
    %c0_i32 = arith.constant 0 : i32
    %c0_i32_0 = arith.constant 0 : i32
    %c0_i32_1 = arith.constant 0 : i32
    return %c0_i32, %c0_i32_0 : i32, i32
  }
  func.func @transform_4(%arg0: i32) -> (i32, i32) {
    %c0_i32 = arith.constant 0 : i32
    %c0_i32_0 = arith.constant 0 : i32
    %c0_i32_1 = arith.constant 0 : i32
    return %c0_i32, %c0_i32_0 : i32, i32
  }
  func.func @transform_5(%arg0: i32) -> (i32, i32) {
    %c0_i32 = arith.constant 0 : i32
    %c0_i32_0 = arith.constant 0 : i32
    %c0_i32_1 = arith.constant 0 : i32
    return %c0_i32, %c0_i32_0 : i32, i32
  }
  func.func @transform_6(%arg0: i32) -> (i32, i32) {
    %c0_i32 = arith.constant 0 : i32
    %c0_i32_0 = arith.constant 0 : i32
    %c0_i32_1 = arith.constant 0 : i32
    return %c0_i32, %c0_i32_0 : i32, i32
  }
  func.func @transform_7(%arg0: i32) -> (i32, i32) {
    %c0_i32 = arith.constant 0 : i32
    %c0_i32_0 = arith.constant 0 : i32
    return %arg0, %c0_i32 : i32, i32
  }
}

</mosaic_0001>

<llo_original>
// kernel: _net_forward_impl.1
$region0: #{_net_forward_impl.1}
  #allocation0 [shape = 'u32[]', space=smem, size = 0x4, offset = 0x4, fixed_abs, tag = 'smem constant byte address 0x4 - core index']
  #allocation1 [shape = 'u32[144,128]{1,0:T(1,128)}', space=vmem, size = 0x12000, scoped, tag = 'internal scratch']
  %s0 = inlined_call_operand.vmem [shape: f32[8,98], index: 0, kind: input, shape index: {}]
  %s1 = inlined_call_operand.vmem [shape: f32[98,64], index: 1, kind: input, shape index: {}]
  %s2 = inlined_call_operand.vmem [shape: f32[1,64], index: 2, kind: input, shape index: {}]
  %s3 = inlined_call_operand.vmem [shape: f32[64,32], index: 3, kind: input, shape index: {}]
  %s4 = inlined_call_operand.vmem [shape: f32[1,32], index: 4, kind: input, shape index: {}]
  %s5 = inlined_call_operand.vmem [shape: f32[32,3], index: 5, kind: input, shape index: {}]
  %s6 = inlined_call_operand.vmem [shape: f32[1,3], index: 6, kind: input, shape index: {}]
  %s7 = inlined_call_operand.vmem [shape: f32[8,3], index: 7, kind: output, shape index: {}]
  %s8 = sld [smem:[#allocation0]]
  $region38: #{_net_forward_impl.1} parent=0
    _
  %s10 = ssub.s32 1, %s8
  %s11 = scalar_select 0, %s10, %s8
  // Predicated region
  $region2: #{_net_forward_impl.1} parent=0 // pred_check
    _
  $region3: #{_net_forward_impl.1} parent=0 // pred_check_branch
    %13 = sbr.rel (0) target = $region5
  $region4: #{_net_forward_impl.1} parent=0 // pred_region
    _
  $region5: #{_net_forward_impl.1} parent=0 // pred_fallthru
    _
  // Predicated region
  $region6: #{_net_forward_impl.1} parent=0 // pred_check
    _
  $region7: #{_net_forward_impl.1} parent=0 // pred_check_branch
    %15 = sbr.rel (0) target = $region9
  $region8: #{_net_forward_impl.1} parent=0 // pred_region
    _
  $region9: #{_net_forward_impl.1} parent=0 // pred_fallthru
    _
  // Predicated region
  $region10: #{_net_forward_impl.1} parent=0 // pred_check
    _
  $region11: #{_net_forward_impl.1} parent=0 // pred_check_branch
    %17 = sbr.rel (0) target = $region13
  $region12: #{_net_forward_impl.1} parent=0 // pred_region
    _
  $region13: #{_net_forward_impl.1} parent=0 // pred_fallthru
    _
  // Predicated region
  $region14: #{_net_forward_impl.1} parent=0 // pred_check
    _
  $region15: #{_net_forward_impl.1} parent=0 // pred_check_branch
    %19 = sbr.rel (0) target = $region17
  $region16: #{_net_forward_impl.1} parent=0 // pred_region
    _
  $region17: #{_net_forward_impl.1} parent=0 // pred_fallthru
    _
  // Predicated region
  $region18: #{_net_forward_impl.1} parent=0 // pred_check
    _
  $region19: #{_net_forward_impl.1} parent=0 // pred_check_branch
    %21 = sbr.rel (0) target = $region21
  $region20: #{_net_forward_impl.1} parent=0 // pred_region
    _
  $region21: #{_net_forward_impl.1} parent=0 // pred_fallthru
    _
  // Predicated region
  $region22: #{_net_forward_impl.1} parent=0 // pred_check
    _
  $region23: #{_net_forward_impl.1} parent=0 // pred_check_branch
    %23 = sbr.rel (0) target = $region25
  $region24: #{_net_forward_impl.1} parent=0 // pred_region
    _
  $region25: #{_net_forward_impl.1} parent=0 // pred_fallthru
    _
  // Predicated region
  $region26: #{_net_forward_impl.1} parent=0 // pred_check
    _
  $region27: #{_net_forward_impl.1} parent=0 // pred_check_branch
    %25 = sbr.rel (0) target = $region29
  $region28: #{_net_forward_impl.1} parent=0 // pred_region
    _
  $region29: #{_net_forward_impl.1} parent=0 // pred_fallthru
    _
  %v26 = vld [vmem:[%s0] sm:$0xff]
  %v27 = vld [vmem:[%s1] sm:$0xff]
  %v28 = vld [vmem:[%s1 + $0x8] sm:$0xff]
  %v29 = vld [vmem:[%s1 + $0x10] sm:$0xff]
  %v30 = vld [vmem:[%s1 + $0x18] sm:$0xff]
  %v31 = vld [vmem:[%s1 + $0x20] sm:$0xff]
  %v32 = vld [vmem:[%s1 + $0x28] sm:$0xff]
  %v33 = vld [vmem:[%s1 + $0x30] sm:$0xff]
  %v34 = vld [vmem:[%s1 + $0x38] sm:$0xff]
  %v35 = vld [vmem:[%s1 + $0x40] sm:$0xff]
  %v36 = vld [vmem:[%s1 + $0x48] sm:$0xff]
  %v37 = vld [vmem:[%s1 + $0x50] sm:$0xff]
  %v38 = vld [vmem:[%s1 + $0x58] sm:$0xff]
  %v39 = vld [vmem:[%s1 + $0x60] sm:$0x3]
  %v40 = vld [vmem:[%s2] sm:$0x1]
  %v42 = vlaneseq
  %v43 = vshrl.u32 %v42, 7
  %v44 = vsub.s32 0, %v43
  %v45 = vrot.slane %v40, %v44
  %vm47 = vcmask 801792
  %v49 = vsel %vm47, %v26, 0
  %vm51 = vcmask 1041408
  %v53 = vsel %vm51, %v39, 0
  %55 = vmatprep.subr.mxu0 0.0
  %56 = vmatpush1.msra.mxu0 %v27
  %57 = vmatprep.subr.mxu0 0.0
  %58 = vmatpush1.msra.mxu0 %v28
  %59 = vmatprep.subr.mxu0 0.0
  %60 = vmatpush1.msra.mxu0 %v29
  %61 = vmatprep.subr.mxu0 0.0
  %62 = vmatpush1.msra.mxu0 %v30
  %63 = vmatprep.subr.mxu0 0.0
  %64 = vmatpush1.msra.mxu0 %v31
  %65 = vmatprep.subr.mxu0 0.0
  %66 = vmatpush1.msra.mxu0 %v32
  %67 = vmatprep.subr.mxu0 0.0
  %68 = vmatpush1.msra.mxu0 %v33
  %69 = vmatprep.subr.mxu0 0.0
  %70 = vmatpush1.msra.mxu0 %v34
  %71 = vmatprep.subr.mxu0 0.0
  %72 = vmatpush1.msra.mxu0 %v35
  %73 = vmatprep.subr.mxu0 0.0
  %74 = vmatpush1.msra.mxu0 %v36
  %75 = vmatprep.subr.mxu0 0.0
  %76 = vmatpush1.msra.mxu0 %v37
  %77 = vmatprep.subr.mxu0 0.0
  %78 = vmatpush1.msra.mxu0 %v38
  %79 = vmatprep.subr.mxu0 0.0
  %80 = vmatpush1.msra.mxu0 %v53
  %81 = vmatprep.subr.mxu0 0.0
  %82 = vmatpush1.msra.mxu0 0.0
  %83 = vmatprep.subr.mxu0 0.0
  %84 = vmatpush1.msra.mxu0 0.0
  %85 = vmatprep.subr.mxu0 0.0
  %86 = vmatpush1.msra.mxu0 0.0
  %87 = vmatprep.subr.mxu0 0.0
  %88 = vmatpush1.msra.mxu0 0.0
  %89 = vmatprep.subr.mxu0 0.0
  %90 = vmatpush1.msra.mxu0 0.0
  %91 = vmatprep.subr.mxu0 0.0
  %92 = vmatpush1.msra.mxu0 0.0
  %93 = vmatprep.subr.mxu0 0.0
  %94 = vmatpush1.msra.mxu0 0.0
  %95 = vmatprep.subr.mxu0 0.0
  %96 = vmatpush1.msra.mxu0 0.0
  %97 = vmatprep.subr.mxu0 0.0
  %98 = vmatpush1.msra.mxu0 0.0
  %99 = vmatprep.subr.mxu0 0.0
  %100 = vmatpush1.msra.mxu0 0.0
  %101 = vmatprep.subr.mxu0 0.0
  %102 = vmatpush1.msra.mxu0 0.0
  %103 = vmatprep.subr.mxu0 0.0
  %104 = vmatpush1.msra.mxu0 0.0
  %105 = vmatprep.subr.mxu0 0.0
  %106 = vmatpush1.msra.mxu0 0.0
  %107 = vmatprep.subr.mxu0 0.0
  %108 = vmatpush1.msra.mxu0 0.0
  %109 = vmatprep.subr.mxu0 0.0
  %110 = vmatpush1.msra.mxu0 0.0
  %111 = vmatprep.subr.mxu0 0.0
  %112 = vmatpush1.msra.mxu0 0.0
  %113 = vmatprep.subr.mxu0 0.0
  %114 = vmatpush1.msra.mxu0 0.0
  %115 = vmatprep.subr.mxu0 0.0
  %116 = vmatpush1.msra.mxu0 0.0
  %117 = vmatprep.subr.mxu0 0.0
  %118 = vmatpush1.msra.mxu0 0.0
  %119 = vmatprep.mubr.f32.mxu0 0.0
  %120 = vmatmul.mubr.f32.gmra.mrb[0].mxu0 %v49
  %v121 = vpop.f32.mrb[0].mxu0
  %v122 = vadd.f32 %v45, %v121
  %v123 = vpop.f32.mrb[0].mxu0
  %124 = vdwg.mxu0
  %v125 = vmax.f32 %v122, 0.0
  %v126 = vld [vmem:[%s3] sm:$0xff]
  %v127 = vld [vmem:[%s3 + $0x8] sm:$0xff]
  %v128 = vld [vmem:[%s3 + $0x10] sm:$0xff]
  %v129 = vld [vmem:[%s3 + $0x18] sm:$0xff]
  %v130 = vld [vmem:[%s3 + $0x20] sm:$0xff]
  %v131 = vld [vmem:[%s3 + $0x28] sm:$0xff]
  %v132 = vld [vmem:[%s3 + $0x30] sm:$0xff]
  %v133 = vld [vmem:[%s3 + $0x38] sm:$0xff]
  %v134 = vld [vmem:[%s4] sm:$0x1]
  %v136 = vlaneseq
  %v137 = vshrl.u32 %v136, 7
  %v138 = vsub.s32 0, %v137
  %v139 = vrot.slane %v134, %v138
  %vm141 = vcmask 523264
  %v143 = vsel %vm141, %v125, 0
  %145 = vmatprep.subr.mxu0 0.0
  %146 = vmatpush1.msra.mxu0 %v126
  %147 = vmatprep.subr.mxu0 0.0
  %148 = vmatpush1.msra.mxu0 %v127
  %149 = vmatprep.subr.mxu0 0.0
  %150 = vmatpush1.msra.mxu0 %v128
  %151 = vmatprep.subr.mxu0 0.0
  %152 = vmatpush1.msra.mxu0 %v129
  %153 = vmatprep.subr.mxu0 0.0
  %154 = vmatpush1.msra.mxu0 %v130
  %155 = vmatprep.subr.mxu0 0.0
  %156 = vmatpush1.msra.mxu0 %v131
  %157 = vmatprep.subr.mxu0 0.0
  %158 = vmatpush1.msra.mxu0 %v132
  %159 = vmatprep.subr.mxu0 0.0
  %160 = vmatpush1.msra.mxu0 %v133
  %161 = vmatprep.subr.mxu0 0.0
  %162 = vmatpush1.msra.mxu0 0.0
  %163 = vmatprep.subr.mxu0 0.0
  %164 = vmatpush1.msra.mxu0 0.0
  %165 = vmatprep.subr.mxu0 0.0
  %166 = vmatpush1.msra.mxu0 0.0
  %167 = vmatprep.subr.mxu0 0.0
  %168 = vmatpush1.msra.mxu0 0.0
  %169 = vmatprep.subr.mxu0 0.0
  %170 = vmatpush1.msra.mxu0 0.0
  %171 = vmatprep.subr.mxu0 0.0
  %172 = vmatpush1.msra.mxu0 0.0
  %173 = vmatprep.subr.mxu0 0.0
  %174 = vmatpush1.msra.mxu0 0.0
  %175 = vmatprep.subr.mxu0 0.0
  %176 = vmatpush1.msra.mxu0 0.0
  %177 = vmatprep.subr.mxu0 0.0
  %178 = vmatpush1.msra.mxu0 0.0
  %179 = vmatprep.subr.mxu0 0.0
  %180 = vmatpush1.msra.mxu0 0.0
  %181 = vmatprep.subr.mxu0 0.0
  %182 = vmatpush1.msra.mxu0 0.0
  %183 = vmatprep.subr.mxu0 0.0
  %184 = vmatpush1.msra.mxu0 0.0
  %185 = vmatprep.subr.mxu0 0.0
  %186 = vmatpush1.msra.mxu0 0.0
  %187 = vmatprep.subr.mxu0 0.0
  %188 = vmatpush1.msra.mxu0 0.0
  %189 = vmatprep.subr.mxu0 0.0
  %190 = vmatpush1.msra.mxu0 0.0
  %191 = vmatprep.subr.mxu0 0.0
  %192 = vmatpush1.msra.mxu0 0.0
  %193 = vmatprep.subr.mxu0 0.0
  %194 = vmatpush1.msra.mxu0 0.0
  %195 = vmatprep.subr.mxu0 0.0
  %196 = vmatpush1.msra.mxu0 0.0
  %197 = vmatprep.subr.mxu0 0.0
  %198 = vmatpush1.msra.mxu0 0.0
  %199 = vmatprep.subr.mxu0 0.0
  %200 = vmatpush1.msra.mxu0 0.0
  %201 = vmatprep.subr.mxu0 0.0
  %202 = vmatpush1.msra.mxu0 0.0
  %203 = vmatprep.subr.mxu0 0.0
  %204 = vmatpush1.msra.mxu0 0.0
  %205 = vmatprep.subr.mxu0 0.0
  %206 = vmatpush1.msra.mxu0 0.0
  %207 = vmatprep.subr.mxu0 0.0
  %208 = vmatpush1.msra.mxu0 0.0
  %209 = vmatprep.mubr.f32.mxu0 0.0
  %210 = vmatmul.mubr.f32.gmra.mrb[0].mxu0 %v143
  %v211 = vpop.f32.mrb[0].mxu0
  %v212 = vadd.f32 %v139, %v211
  %v213 = vpop.f32.mrb[0].mxu0
  %214 = vdwg.mxu0
  %v215 = vmax.f32 %v212, 0.0
  %v216 = vld [vmem:[%s5] sm:$0xff]
  %v217 = vld [vmem:[%s5 + $0x8] sm:$0xff]
  %v218 = vld [vmem:[%s5 + $0x10] sm:$0xff]
  %v219 = vld [vmem:[%s5 + $0x18] sm:$0xff]
  %v220 = vld [vmem:[%s6] sm:$0x1]
  %v222 = vlaneseq
  %v223 = vshrl.u32 %v222, 7
  %v224 = vsub.s32 0, %v223
  %v225 = vrot.slane %v220, %v224
  %vm227 = vcmask 261120
  %v229 = vsel %vm227, %v215, 0
  %231 = vmatprep.subr.mxu0 0.0
  %232 = vmatpush1.msra.mxu0 %v216
  %233 = vmatprep.subr.mxu0 0.0
  %234 = vmatpush1.msra.mxu0 %v217
  %235 = vmatprep.subr.mxu0 0.0
  %236 = vmatpush1.msra.mxu0 %v218
  %237 = vmatprep.subr.mxu0 0.0
  %238 = vmatpush1.msra.mxu0 %v219
  %239 = vmatprep.subr.mxu0 0.0
  %240 = vmatpush1.msra.mxu0 0.0
  %241 = vmatprep.subr.mxu0 0.0
  %242 = vmatpush1.msra.mxu0 0.0
  %243 = vmatprep.subr.mxu0 0.0
  %244 = vmatpush1.msra.mxu0 0.0
  %245 = vmatprep.subr.mxu0 0.0
  %246 = vmatpush1.msra.mxu0 0.0
  %247 = vmatprep.subr.mxu0 0.0
  %248 = vmatpush1.msra.mxu0 0.0
  %249 = vmatprep.subr.mxu0 0.0
  %250 = vmatpush1.msra.mxu0 0.0
  %251 = vmatprep.subr.mxu0 0.0
  %252 = vmatpush1.msra.mxu0 0.0
  %253 = vmatprep.subr.mxu0 0.0
  %254 = vmatpush1.msra.mxu0 0.0
  %255 = vmatprep.subr.mxu0 0.0
  %256 = vmatpush1.msra.mxu0 0.0
  %257 = vmatprep.subr.mxu0 0.0
  %258 = vmatpush1.msra.mxu0 0.0
  %259 = vmatprep.subr.mxu0 0.0
  %260 = vmatpush1.msra.mxu0 0.0
  %261 = vmatprep.subr.mxu0 0.0
  %262 = vmatpush1.msra.mxu0 0.0
  %263 = vmatprep.subr.mxu0 0.0
  %264 = vmatpush1.msra.mxu0 0.0
  %265 = vmatprep.subr.mxu0 0.0
  %266 = vmatpush1.msra.mxu0 0.0
  %267 = vmatprep.subr.mxu0 0.0
  %268 = vmatpush1.msra.mxu0 0.0
  %269 = vmatprep.subr.mxu0 0.0
  %270 = vmatpush1.msra.mxu0 0.0
  %271 = vmatprep.subr.mxu0 0.0
  %272 = vmatpush1.msra.mxu0 0.0
  %273 = vmatprep.subr.mxu0 0.0
  %274 = vmatpush1.msra.mxu0 0.0
  %275 = vmatprep.subr.mxu0 0.0
  %276 = vmatpush1.msra.mxu0 0.0
  %277 = vmatprep.subr.mxu0 0.0
  %278 = vmatpush1.msra.mxu0 0.0
  %279 = vmatprep.subr.mxu0 0.0
  %280 = vmatpush1.msra.mxu0 0.0
  %281 = vmatprep.subr.mxu0 0.0
  %282 = vmatpush1.msra.mxu0 0.0
  %283 = vmatprep.subr.mxu0 0.0
  %284 = vmatpush1.msra.mxu0 0.0
  %285 = vmatprep.subr.mxu0 0.0
  %286 = vmatpush1.msra.mxu0 0.0
  %287 = vmatprep.subr.mxu0 0.0
  %288 = vmatpush1.msra.mxu0 0.0
  %289 = vmatprep.subr.mxu0 0.0
  %290 = vmatpush1.msra.mxu0 0.0
  %291 = vmatprep.subr.mxu0 0.0
  %292 = vmatpush1.msra.mxu0 0.0
  %293 = vmatprep.subr.mxu0 0.0
  %294 = vmatpush1.msra.mxu0 0.0
  %295 = vmatprep.mubr.f32.mxu0 0.0
  %296 = vmatmul.mubr.f32.gmra.mrb[0].mxu0 %v229
  %v297 = vpop.f32.mrb[0].mxu0
  %v298 = vadd.f32 %v225, %v297
  %v299 = vpop.f32.mrb[0].mxu0
  %300 = vdwg.mxu0
  %vm301 = vcmask 23552
  %302 = vst.msk [vmem:[%s7] sm:$0xff] %vm301, %v298
  // Predicated region
  $region30: #{_net_forward_impl.1} parent=0 // pred_check
    _
  $region31: #{_net_forward_impl.1} parent=0 // pred_check_branch
    %304 = sbr.rel (0) target = $region33
  $region32: #{_net_forward_impl.1} parent=0 // pred_region
    _
  $region33: #{_net_forward_impl.1} parent=0 // pred_fallthru
    _
  // Predicated region
  $region34: #{_net_forward_impl.1} parent=0 // pred_check
    _
  $region35: #{_net_forward_impl.1} parent=0 // pred_check_branch
    %306 = sbr.rel (0) target = $region37
  $region36: #{_net_forward_impl.1} parent=0 // pred_region
    _
  $region37: #{_net_forward_impl.1} parent=0 // pred_fallthru
    _

</llo_original>
